<compile_context>
chip_gen: v7x
topology: tpu7x:2x2x1
jax: 0.10.0
libtpu: 0.0.40
codegen_flags: <defaults>
</compile_context>

<pallas_src>
import functools

import jax
import jax.numpy as jnp
from jax import lax
from jax.experimental import pallas as pl
from jax.experimental.pallas import tpu as pltpu

_EPS = 1e-12                        # torch F.normalize default eps
_BLOCK_BYTES = 6 * 1024 * 1024      # per-input-block DMA budget
_VMEM_LIMIT = 40 * 1024 * 1024      # 2 inputs x 2 buffers x 6 MiB + headroom
_CHUNK_LIVE_BYTES = 128 * 1024      # live f32 working set per compute sub-chunk


def _round_up(x, m):
    return ((x + m - 1) // m) * m


def _largest_divisor_leq(n, limit):
    """Largest d with d | n and d <= limit (returns >= 1 when limit >= 1)."""
    best = 1
    i = 1
    while i * i <= n:
        if n % i == 0:
            for d in (i, n // i):
                if d <= limit:
                    best = max(best, d)
        i += 1
    return best


def _sublane_pad(c, itemsize):
    # f32 pads C to a multiple of 8, bf16 to 16, int8/fp8 to 32.
    pack = 8 * max(1, 4 // itemsize)
    return _round_up(c, pack)


def _cos_loss_kernel(x_ref, y_ref, o_ref, *, bn, tc, n_lane_chunks):
    # x_ref, y_ref: (bn, C, T) input blocks; o_ref: (1, 1) partial-sum block.
    def chunk_sum(b, l):
        xs = x_ref[pl.ds(b, 1), :, pl.ds(l, tc)].astype(jnp.float32)  # (1,C,tc)
        ys = y_ref[pl.ds(b, 1), :, pl.ds(l, tc)].astype(jnp.float32)
        xx = jnp.sum(xs * xs, axis=1, keepdims=True)                  # (1,1,tc)
        yy = jnp.sum(ys * ys, axis=1, keepdims=True)
        xy = jnp.sum(xs * ys, axis=1, keepdims=True)
        nx = jnp.maximum(jnp.sqrt(xx), _EPS)   # matches F.normalize eps clamp
        ny = jnp.maximum(jnp.sqrt(yy), _EPS)
        cos = xy / (nx * ny)
        return jnp.sum(1.0 - cos)              # scalar partial sum (XLU reduce)

    n_chunks = bn * n_lane_chunks
    if n_chunks <= 8:
        # Small static trip count: unroll at trace time (LLO visibility).
        total = jnp.float32(0.0)
        for k in range(n_chunks):
            total = total + chunk_sum(k // n_lane_chunks,
                                      (k % n_lane_chunks) * tc)
    else:
        def body(k, acc):
            b = k // n_lane_chunks
            l = pl.multiple_of((k % n_lane_chunks) * tc, 128)
            return acc + chunk_sum(b, l)
        total = lax.fori_loop(0, n_chunks, body, jnp.float32(0.0))

    o_ref[...] = jnp.full((1, 1), total, dtype=jnp.float32)


def cosine_similarity_loss(input1, input2):
    """input1, input2: (N, C, ...) arrays (e.g. NCHW). Returns scalar f32 loss."""
    assert input1.shape == input2.shape
    assert input1.ndim >= 2
    n, c = input1.shape[0], input1.shape[1]
    hw = 1
    for d in input1.shape[2:]:
        hw *= d
    hw = max(hw, 1)

    # Free reshape (no transpose): channels on sublanes, spatial on lanes.
    x = input1.reshape(n, c, hw)
    y = input2.reshape(n, c, hw)

    # Pad the spatial axis to a multiple of 128 lanes.  Zero pixels contribute
    # exactly 1.0 each to the (1 - cos) sum; corrected in the epilogue.
    hw_p = _round_up(hw, 128)
    if hw_p != hw:
        pad = [(0, 0), (0, 0), (0, hw_p - hw)]
        x = jnp.pad(x, pad)
        y = jnp.pad(y, pad)

    itemsize = jnp.dtype(x.dtype).itemsize
    c_pad = _sublane_pad(c, itemsize)

    # Lane tile T: largest multiple-of-128 divisor of hw_p whose (bn=1) block
    # footprint (sublane-padded C, true dtype bytes) fits the DMA budget.
    lane_budget = max(128, _BLOCK_BYTES // (c_pad * itemsize))
    d = _largest_divisor_leq(hw_p // 128, max(1, lane_budget // 128))
    t = 128 * d

    # Batch tile: if one block already covers the whole spatial extent, pack
    # several batch rows per block so small images still move MiB-scale DMAs.
    bn = 1
    if t == hw_p:
        row_bytes = c_pad * hw_p * itemsize
        bn = _largest_divisor_leq(n, max(1, _BLOCK_BYTES // row_bytes))

    # In-kernel compute sub-chunking to bound vreg live ranges (f32 working
    # set for x and y per chunk kept at ~128 KiB).
    c32 = _round_up(c, 8)
    tc_budget = max(128, _CHUNK_LIVE_BYTES // (2 * c32 * 4))
    tc = 128 * _largest_divisor_leq(t // 128, max(1, tc_budget // 128))
    n_lane_chunks = t // tc

    grid = (n // bn, hw_p // t)

    kernel = functools.partial(
        _cos_loss_kernel, bn=bn, tc=tc, n_lane_chunks=n_lane_chunks)

    partial_sums = pl.pallas_call(
        kernel,
        out_shape=jax.ShapeDtypeStruct(grid, jnp.float32),
        grid=grid,
        in_specs=[
            pl.BlockSpec((bn, c, t), lambda i, j: (i, 0, j)),
            pl.BlockSpec((bn, c, t), lambda i, j: (i, 0, j)),
        ],
        out_specs=pl.BlockSpec((1, 1), lambda i, j: (i, j)),
        compiler_params=pltpu.CompilerParams(
            dimension_semantics=("parallel", "parallel"),
            vmem_limit_bytes=_VMEM_LIMIT),
    )(x, y)

    # Tiny epilogue: sum the per-block partials, remove the padded pixels'
    # exact contribution (1.0 each), and divide by the true pixel count.
    total = jnp.sum(partial_sums)
    total = total - jnp.float32(n * (hw_p - hw))
    return total / jnp.float32(n * hw)


def _reference(input1, input2):
    # Pure-JAX reference mirroring the PyTorch module (sanity check).
    def norm(v):
        nrm = jnp.sqrt(jnp.sum(v * v, axis=1, keepdims=True))
        return v / jnp.maximum(nrm, _EPS)
    cos = jnp.sum(norm(input1) * norm(input2), axis=1)
    return jnp.mean(1.0 - cos)


if __name__ == "__main__":
    key = jax.random.PRNGKey(0)
    k1, k2 = jax.random.split(key)
    shape = (2, 4, 16, 16)  # N, C, H, W
    input1 = jax.random.normal(k1, shape, dtype=jnp.float32)
    input2 = jax.random.normal(k2, shape, dtype=jnp.float32)

    loss = cosine_similarity_loss(input1, input2)
    loss = jax.block_until_ready(loss)

    ref = _reference(input1, input2)
    assert jnp.allclose(loss, ref, atol=1e-5, rtol=1e-5), (loss, ref)

    print("KERNEL_OK")
</pallas_src>

<mosaic_0001>
module attributes {stable_mosaic.version = 11 : i64} {
  func.func @_cos_loss_kernel(%arg0: i32, %arg1: i32, %arg2: memref<2x4x256xf32, #tpu.memory_space<vmem>>, %arg3: memref<2x4x256xf32, #tpu.memory_space<vmem>>, %arg4: memref<1x1xf32, #tpu.memory_space<vmem>>) attributes {dimension_semantics = [#tpu.dimension_semantics<parallel>, #tpu.dimension_semantics<parallel>], iteration_bounds = array<i64: 1, 1>, scalar_prefetch = 0 : i64, scratch_operands = 0 : i64, tpu.core_type = #tpu.core_type<tc>, window_params = [{transform_indices = @transform_0, window_bounds = array<i64: 2, 4, 256>}, {transform_indices = @transform_1, window_bounds = array<i64: 2, 4, 256>}, {transform_indices = @transform_2, window_bounds = array<i64: 1, 1>}]} {
    %c0 = arith.constant 0 : index
    %c0_0 = arith.constant 0 : index
    %c0_1 = arith.constant 0 : index
    %0 = vector.load %arg2[%c0, %c0_0, %c0_1] : memref<2x4x256xf32, #tpu.memory_space<vmem>>, vector<1x4x256xf32>
    %c0_2 = arith.constant 0 : index
    %c0_3 = arith.constant 0 : index
    %c0_4 = arith.constant 0 : index
    %1 = vector.load %arg3[%c0_2, %c0_3, %c0_4] : memref<2x4x256xf32, #tpu.memory_space<vmem>>, vector<1x4x256xf32>
    %2 = arith.mulf %0, %0 : vector<1x4x256xf32>
    %cst = arith.constant dense<0.000000e+00> : vector<1x256xf32>
    %3 = vector.multi_reduction <add>, %2, %cst [1] : vector<1x4x256xf32> to vector<1x256xf32>
    %4 = vector.shape_cast %3 : vector<1x256xf32> to vector<1x1x256xf32>
    %5 = arith.mulf %1, %1 : vector<1x4x256xf32>
    %cst_5 = arith.constant dense<0.000000e+00> : vector<1x256xf32>
    %6 = vector.multi_reduction <add>, %5, %cst_5 [1] : vector<1x4x256xf32> to vector<1x256xf32>
    %7 = vector.shape_cast %6 : vector<1x256xf32> to vector<1x1x256xf32>
    %8 = arith.mulf %0, %1 : vector<1x4x256xf32>
    %cst_6 = arith.constant dense<0.000000e+00> : vector<1x256xf32>
    %9 = vector.multi_reduction <add>, %8, %cst_6 [1] : vector<1x4x256xf32> to vector<1x256xf32>
    %10 = vector.shape_cast %9 : vector<1x256xf32> to vector<1x1x256xf32>
    %11 = math.sqrt %4 : vector<1x1x256xf32>
    %cst_7 = arith.constant 9.99999996E-13 : f32
    %12 = vector.broadcast %cst_7 : f32 to vector<1x1x256xf32>
    %13 = arith.maximumf %11, %12 : vector<1x1x256xf32>
    %14 = math.sqrt %7 : vector<1x1x256xf32>
    %cst_8 = arith.constant 9.99999996E-13 : f32
    %15 = vector.broadcast %cst_8 : f32 to vector<1x1x256xf32>
    %16 = arith.maximumf %14, %15 : vector<1x1x256xf32>
    %17 = arith.mulf %13, %16 : vector<1x1x256xf32>
    %18 = arith.divf %10, %17 : vector<1x1x256xf32>
    %cst_9 = arith.constant 1.000000e+00 : f32
    %19 = vector.broadcast %cst_9 : f32 to vector<1x1x256xf32>
    %20 = arith.subf %19, %18 : vector<1x1x256xf32>
    %21 = vector.shape_cast %20 : vector<1x1x256xf32> to vector<1x1x1x256xf32>
    %cst_10 = arith.constant dense<0.000000e+00> : vector<1xf32>
    %22 = vector.multi_reduction <add>, %21, %cst_10 [1, 2, 3] : vector<1x1x1x256xf32> to vector<1xf32>
    %23 = vector.shape_cast %22 : vector<1xf32> to vector<1x1x1x1xf32>
    %24 = vector.extract %23[0, 0, 0, 0] : f32 from vector<1x1x1x1xf32>
    %cst_11 = arith.constant 0.000000e+00 : f32
    %25 = arith.addf %cst_11, %24 : f32
    %c1 = arith.constant 1 : index
    %c0_12 = arith.constant 0 : index
    %c0_13 = arith.constant 0 : index
    %26 = vector.load %arg2[%c1, %c0_12, %c0_13] : memref<2x4x256xf32, #tpu.memory_space<vmem>>, vector<1x4x256xf32>
    %c1_14 = arith.constant 1 : index
    %c0_15 = arith.constant 0 : index
    %c0_16 = arith.constant 0 : index
    %27 = vector.load %arg3[%c1_14, %c0_15, %c0_16] : memref<2x4x256xf32, #tpu.memory_space<vmem>>, vector<1x4x256xf32>
    %28 = arith.mulf %26, %26 : vector<1x4x256xf32>
    %cst_17 = arith.constant dense<0.000000e+00> : vector<1x256xf32>
    %29 = vector.multi_reduction <add>, %28, %cst_17 [1] : vector<1x4x256xf32> to vector<1x256xf32>
    %30 = vector.shape_cast %29 : vector<1x256xf32> to vector<1x1x256xf32>
    %31 = arith.mulf %27, %27 : vector<1x4x256xf32>
    %cst_18 = arith.constant dense<0.000000e+00> : vector<1x256xf32>
    %32 = vector.multi_reduction <add>, %31, %cst_18 [1] : vector<1x4x256xf32> to vector<1x256xf32>
    %33 = vector.shape_cast %32 : vector<1x256xf32> to vector<1x1x256xf32>
    %34 = arith.mulf %26, %27 : vector<1x4x256xf32>
    %cst_19 = arith.constant dense<0.000000e+00> : vector<1x256xf32>
    %35 = vector.multi_reduction <add>, %34, %cst_19 [1] : vector<1x4x256xf32> to vector<1x256xf32>
    %36 = vector.shape_cast %35 : vector<1x256xf32> to vector<1x1x256xf32>
    %37 = math.sqrt %30 : vector<1x1x256xf32>
    %cst_20 = arith.constant 9.99999996E-13 : f32
    %38 = vector.broadcast %cst_20 : f32 to vector<1x1x256xf32>
    %39 = arith.maximumf %37, %38 : vector<1x1x256xf32>
    %40 = math.sqrt %33 : vector<1x1x256xf32>
    %cst_21 = arith.constant 9.99999996E-13 : f32
    %41 = vector.broadcast %cst_21 : f32 to vector<1x1x256xf32>
    %42 = arith.maximumf %40, %41 : vector<1x1x256xf32>
    %43 = arith.mulf %39, %42 : vector<1x1x256xf32>
    %44 = arith.divf %36, %43 : vector<1x1x256xf32>
    %cst_22 = arith.constant 1.000000e+00 : f32
    %45 = vector.broadcast %cst_22 : f32 to vector<1x1x256xf32>
    %46 = arith.subf %45, %44 : vector<1x1x256xf32>
    %47 = vector.shape_cast %46 : vector<1x1x256xf32> to vector<1x1x1x256xf32>
    %cst_23 = arith.constant dense<0.000000e+00> : vector<1xf32>
    %48 = vector.multi_reduction <add>, %47, %cst_23 [1, 2, 3] : vector<1x1x1x256xf32> to vector<1xf32>
    %49 = vector.shape_cast %48 : vector<1xf32> to vector<1x1x1x1xf32>
    %50 = vector.extract %49[0, 0, 0, 0] : f32 from vector<1x1x1x1xf32>
    %51 = arith.addf %25, %50 : f32
    %52 = vector.broadcast %51 : f32 to vector<1x1xf32>
    %c0_24 = arith.constant 0 : index
    %c0_25 = arith.constant 0 : index
    %53 = vector.load %arg4[%c0_24, %c0_25] : memref<1x1xf32, #tpu.memory_space<vmem>>, vector<1x1xf32>
    tpu.vector_store %arg4[%c0_24, %c0_25], %52 {strides = array<i32>} : memref<1x1xf32, #tpu.memory_space<vmem>>, vector<1x1xf32>,
    return
  }
  func.func @transform_0(%arg0: i32, %arg1: i32) -> (i32, i32, i32) {
    %c0_i32 = arith.constant 0 : i32
    %c0_i32_0 = arith.constant 0 : i32
    return %arg0, %c0_i32, %arg1 : i32, i32, i32
  }
  func.func @transform_1(%arg0: i32, %arg1: i32) -> (i32, i32, i32) {
    %c0_i32 = arith.constant 0 : i32
    %c0_i32_0 = arith.constant 0 : i32
    return %arg0, %c0_i32, %arg1 : i32, i32, i32
  }
  func.func @transform_2(%arg0: i32, %arg1: i32) -> (i32, i32) {
    %c0_i32 = arith.constant 0 : i32
    return %arg0, %arg1 : i32, i32
  }
}

</mosaic_0001>

<llo_original>
// kernel: tpu_custom_call.1
$region0: #{tpu_custom_call.1}
  #allocation0 [shape = 'u32[]', space=smem, size = 0x4, offset = 0x4, fixed_abs, tag = 'smem constant byte address 0x4 - core index']
  #allocation1 [shape = 'u32[144,128]{1,0:T(1,128)}', space=vmem, size = 0x12000, scoped, tag = 'internal scratch']
  %s0 = inlined_call_operand.hbm [shape: f32[2,4,256], index: 0, kind: input, shape index: {}]
  %s1 = inlined_call_operand.hbm [shape: f32[2,4,256], index: 1, kind: input, shape index: {}]
  %s2 = inlined_call_operand.hbm [shape: f32[1,1], index: 2, kind: output, shape index: {}]
  %s3 = sld [smem:[#allocation0]]
  $region26: #{tpu_custom_call.1} parent=0
    _
  %s5 = ssub.s32 1, %s3
  %s6 = scalar_select 0, %s5, %s3
  $region1: #{tpu_custom_call.1} parent=0
    #allocation2 [shape = 'u8[8192]{0}', space=vmem, size = 0x2000, scoped, tag = 'input window, operand 0, single buffered']
    #allocation3 [shape = 's32[1]{0}', space=sflag, size = 0x4, scoped, tag = 'scoped memory for tpu_custom_call.1']
    #allocation4 [shape = 's32[1]{0}', space=sflag, size = 0x4, scoped, tag = 'scoped memory for tpu_custom_call.1']
    #allocation5 [shape = 'u8[8192]{0}', space=vmem, size = 0x2000, scoped, tag = 'input window, operand 1, single buffered']
    #allocation6 [shape = 's32[1]{0}', space=sflag, size = 0x4, scoped, tag = 'scoped memory for tpu_custom_call.1']
    #allocation7 [shape = 'u8[512]{0}', space=vmem, size = 0x400, scoped, tag = 'output window, operand 0, single buffered']
    %7 = vsyncpa [#allocation3], 0
    %8 = vsyncpa [#allocation6], 0
    %9 = vsyncpa [#allocation4], 0
    // Predicated region
    $region2: #{tpu_custom_call.1} parent=1 // pred_check
      _
    $region3: #{tpu_custom_call.1} parent=1 // pred_check_branch
      %11 = sbr.rel (0) target = $region5
    $region4: #{tpu_custom_call.1} parent=1 // pred_region
      %s13 = ssub.s32 256, 256
      %14 = vsyncadd [#allocation3], %s13
      %s15 = sshll.u32 [#allocation2], 4
      %s16 = int_to_ptr.vmem [resolvable:$true] %s15
      %21 = dma.hbm_to_vmem [thread:$0]  %s0, 256, %s16, [#allocation3], 128, 128, 8
    $region5: #{tpu_custom_call.1} parent=1 // pred_fallthru
      _
    // Predicated region
    $region6: #{tpu_custom_call.1} parent=1 // pred_check
      _
    $region7: #{tpu_custom_call.1} parent=1 // pred_check_branch
      %23 = sbr.rel (0) target = $region9
    $region8: #{tpu_custom_call.1} parent=1 // pred_region
      %s25 = ssub.s32 256, 256
      %26 = vsyncadd [#allocation6], %s25
      %s27 = sshll.u32 [#allocation5], 4
      %s28 = int_to_ptr.vmem [resolvable:$true] %s27
      %33 = dma.hbm_to_vmem [thread:$0]  %s1, 256, %s28, [#allocation6], 128, 128, 8
    $region9: #{tpu_custom_call.1} parent=1 // pred_fallthru
      _
    // Predicated region
    $region10: #{tpu_custom_call.1} parent=1 // pred_check
      _
    $region11: #{tpu_custom_call.1} parent=1 // pred_check_branch
      %35 = sbr.rel (0) target = $region13
    $region12: #{tpu_custom_call.1} parent=1 // pred_region
      %36 = dma.done [#allocation3], 256
    $region13: #{tpu_custom_call.1} parent=1 // pred_fallthru
      _
    // Predicated region
    $region14: #{tpu_custom_call.1} parent=1 // pred_check
      _
    $region15: #{tpu_custom_call.1} parent=1 // pred_check_branch
      %38 = sbr.rel (0) target = $region17
    $region16: #{tpu_custom_call.1} parent=1 // pred_region
      %39 = dma.done [#allocation6], 256
    $region17: #{tpu_custom_call.1} parent=1 // pred_fallthru
      _
    %v40 = vld [vmem:[#allocation2] sm:$0xff]
    %v41 = vld [vmem:[#allocation5] sm:$0xff]
    %v42 = vmul.f32 %v40, %v40
    %v44 = vcombine.high %v42, %v42
    %vm46 = vcmask 1043456
    %v47 = vsel %vm46, %v42, 0.0
    %v48 = vrot.slane %v47, 4
    %v49 = vadd.f32 %v47, %v48
    %v50 = vrot.slane %v49, 2
    %v51 = vadd.f32 %v49, %v50
    %v52 = vrot.slane %v51, 1
    %v53 = vadd.f32 %v51, %v52
    %v54 = vsel %vm46, %v44, 0.0
    %v55 = vrot.slane %v54, 4
    %v56 = vadd.f32 %v54, %v55
    %v57 = vrot.slane %v56, 2
    %v58 = vadd.f32 %v56, %v57
    %v59 = vrot.slane %v58, 1
    %v60 = vadd.f32 %v58, %v59
    %v61 = vmul.f32 %v41, %v41
    %v63 = vcombine.high %v61, %v61
    %v65 = vsel %vm46, %v61, 0.0
    %v66 = vrot.slane %v65, 4
    %v67 = vadd.f32 %v65, %v66
    %v68 = vrot.slane %v67, 2
    %v69 = vadd.f32 %v67, %v68
    %v70 = vrot.slane %v69, 1
    %v71 = vadd.f32 %v69, %v70
    %v72 = vsel %vm46, %v63, 0.0
    %v73 = vrot.slane %v72, 4
    %v74 = vadd.f32 %v72, %v73
    %v75 = vrot.slane %v74, 2
    %v76 = vadd.f32 %v74, %v75
    %v77 = vrot.slane %v76, 1
    %v78 = vadd.f32 %v76, %v77
    %v79 = vmul.f32 %v40, %v41
    %v81 = vcombine.high %v79, %v79
    %v83 = vsel %vm46, %v79, 0.0
    %v84 = vrot.slane %v83, 4
    %v85 = vadd.f32 %v83, %v84
    %v86 = vrot.slane %v85, 2
    %v87 = vadd.f32 %v85, %v86
    %v88 = vrot.slane %v87, 1
    %v89 = vadd.f32 %v87, %v88
    %v90 = vsel %vm46, %v81, 0.0
    %v91 = vrot.slane %v90, 4
    %v92 = vadd.f32 %v90, %v91
    %v93 = vrot.slane %v92, 2
    %v94 = vadd.f32 %v92, %v93
    %v95 = vrot.slane %v94, 1
    %v96 = vadd.f32 %v94, %v95
    %v97 = vrsqrt.pop %v53
    %v98 = vmul.f32 %v53, %v97
    %vm99 = vcmp.eq.f32.partialorder %v53, inf
    %v100 = vsel %vm99, %v53, %v98
    %vm101 = vcmp.eq.f32.partialorder %v53, 0.0
    %v102 = vand.u32 %v53, 2147483648
    %v103 = vsel %vm101, %v102, %v100
    %v104 = vrsqrt.pop %v60
    %v105 = vmul.f32 %v60, %v104
    %vm106 = vcmp.eq.f32.partialorder %v60, inf
    %v107 = vsel %vm106, %v60, %v105
    %vm108 = vcmp.eq.f32.partialorder %v60, 0.0
    %v109 = vand.u32 %v60, 2147483648
    %v110 = vsel %vm108, %v109, %v107
    %v111 = vmax.f32 %v103, 1e-12
    %v112 = vmax.f32 %v110, 1e-12
    %v113 = vrsqrt.pop %v71
    %v114 = vmul.f32 %v71, %v113
    %vm115 = vcmp.eq.f32.partialorder %v71, inf
    %v116 = vsel %vm115, %v71, %v114
    %vm117 = vcmp.eq.f32.partialorder %v71, 0.0
    %v118 = vand.u32 %v71, 2147483648
    %v119 = vsel %vm117, %v118, %v116
    %v120 = vrsqrt.pop %v78
    %v121 = vmul.f32 %v78, %v120
    %vm122 = vcmp.eq.f32.partialorder %v78, inf
    %v123 = vsel %vm122, %v78, %v121
    %vm124 = vcmp.eq.f32.partialorder %v78, 0.0
    %v125 = vand.u32 %v78, 2147483648
    %v126 = vsel %vm124, %v125, %v123
    %v127 = vmax.f32 %v119, 1e-12
    %v128 = vmax.f32 %v126, 1e-12
    %v129 = vmul.f32 %v111, %v127
    %v130 = vmul.f32 %v112, %v128
    %v131 = vrcp.pop %v129
    %v132 = vmul.f32 %v89, %v131
    %v133 = vrcp.pop %v130
    %v134 = vmul.f32 %v96, %v133
    %v135 = vsub.f32 1.0, %v132
    %v136 = vsub.f32 1.0, %v134
    %vm137 = vcmask 1040384
    %v138 = vsel %vm137, %v135, 0.0
    %v139 = vsel %vm137, %v136, 0.0
    %v140 = vadd.f32 %v138, %v139
    %141 = vadd.xlane.f32.xlu0 %v140
    %v142 = vpop.xlane.xlu0 %141
    %v143 = vrot.slane %v142, 4
    %v144 = vadd.f32 %v142, %v143
    %v145 = vrot.slane %v144, 2
    %v146 = vadd.f32 %v144, %v145
    %v147 = vrot.slane %v146, 1
    %v148 = vadd.f32 %v146, %v147
    %s149 = vtos %v148
    %s150 = sadd.f32 %s149, 0.0
    %s151 = scalar_lea.vmem [#allocation2], 8
    %v152 = vld [vmem:[%s151] sm:$0xff]
    %s153 = scalar_lea.vmem [#allocation5], 8
    %v154 = vld [vmem:[%s153] sm:$0xff]
    %v155 = vmul.f32 %v152, %v152
    %v157 = vcombine.high %v155, %v155
    %v159 = vsel %vm46, %v155, 0.0
    %v160 = vrot.slane %v159, 4
    %v161 = vadd.f32 %v159, %v160
    %v162 = vrot.slane %v161, 2
    %v163 = vadd.f32 %v161, %v162
    %v164 = vrot.slane %v163, 1
    %v165 = vadd.f32 %v163, %v164
    %v166 = vsel %vm46, %v157, 0.0
    %v167 = vrot.slane %v166, 4
    %v168 = vadd.f32 %v166, %v167
    %v169 = vrot.slane %v168, 2
    %v170 = vadd.f32 %v168, %v169
    %v171 = vrot.slane %v170, 1
    %v172 = vadd.f32 %v170, %v171
    %v173 = vmul.f32 %v154, %v154
    %v175 = vcombine.high %v173, %v173
    %v177 = vsel %vm46, %v173, 0.0
    %v178 = vrot.slane %v177, 4
    %v179 = vadd.f32 %v177, %v178
    %v180 = vrot.slane %v179, 2
    %v181 = vadd.f32 %v179, %v180
    %v182 = vrot.slane %v181, 1
    %v183 = vadd.f32 %v181, %v182
    %v184 = vsel %vm46, %v175, 0.0
    %v185 = vrot.slane %v184, 4
    %v186 = vadd.f32 %v184, %v185
    %v187 = vrot.slane %v186, 2
    %v188 = vadd.f32 %v186, %v187
    %v189 = vrot.slane %v188, 1
    %v190 = vadd.f32 %v188, %v189
    %v191 = vmul.f32 %v152, %v154
    %v193 = vcombine.high %v191, %v191
    %v195 = vsel %vm46, %v191, 0.0
    %v196 = vrot.slane %v195, 4
    %v197 = vadd.f32 %v195, %v196
    %v198 = vrot.slane %v197, 2
    %v199 = vadd.f32 %v197, %v198
    %v200 = vrot.slane %v199, 1
    %v201 = vadd.f32 %v199, %v200
    %v202 = vsel %vm46, %v193, 0.0
    %v203 = vrot.slane %v202, 4
    %v204 = vadd.f32 %v202, %v203
    %v205 = vrot.slane %v204, 2
    %v206 = vadd.f32 %v204, %v205
    %v207 = vrot.slane %v206, 1
    %v208 = vadd.f32 %v206, %v207
    %v209 = vrsqrt.pop %v165
    %v210 = vmul.f32 %v165, %v209
    %vm211 = vcmp.eq.f32.partialorder %v165, inf
    %v212 = vsel %vm211, %v165, %v210
    %vm213 = vcmp.eq.f32.partialorder %v165, 0.0
    %v214 = vand.u32 %v165, 2147483648
    %v215 = vsel %vm213, %v214, %v212
    %v216 = vrsqrt.pop %v172
    %v217 = vmul.f32 %v172, %v216
    %vm218 = vcmp.eq.f32.partialorder %v172, inf
    %v219 = vsel %vm218, %v172, %v217
    %vm220 = vcmp.eq.f32.partialorder %v172, 0.0
    %v221 = vand.u32 %v172, 2147483648
    %v222 = vsel %vm220, %v221, %v219
    %v223 = vmax.f32 %v215, 1e-12
    %v224 = vmax.f32 %v222, 1e-12
    %v225 = vrsqrt.pop %v183
    %v226 = vmul.f32 %v183, %v225
    %vm227 = vcmp.eq.f32.partialorder %v183, inf
    %v228 = vsel %vm227, %v183, %v226
    %vm229 = vcmp.eq.f32.partialorder %v183, 0.0
    %v230 = vand.u32 %v183, 2147483648
    %v231 = vsel %vm229, %v230, %v228
    %v232 = vrsqrt.pop %v190
    %v233 = vmul.f32 %v190, %v232
    %vm234 = vcmp.eq.f32.partialorder %v190, inf
    %v235 = vsel %vm234, %v190, %v233
    %vm236 = vcmp.eq.f32.partialorder %v190, 0.0
    %v237 = vand.u32 %v190, 2147483648
    %v238 = vsel %vm236, %v237, %v235
    %v239 = vmax.f32 %v231, 1e-12
    %v240 = vmax.f32 %v238, 1e-12
    %v241 = vmul.f32 %v223, %v239
    %v242 = vmul.f32 %v224, %v240
    %v243 = vrcp.pop %v241
    %v244 = vmul.f32 %v201, %v243
    %v245 = vrcp.pop %v242
    %v246 = vmul.f32 %v208, %v245
    %v247 = vsub.f32 1.0, %v244
    %v248 = vsub.f32 1.0, %v246
    %v249 = vsel %vm137, %v247, 0.0
    %v250 = vsel %vm137, %v248, 0.0
    %v251 = vadd.f32 %v249, %v250
    %252 = vadd.xlane.f32.xlu0 %v251
    %v253 = vpop.xlane.xlu0 %252
    %v254 = vrot.slane %v253, 4
    %v255 = vadd.f32 %v253, %v254
    %v256 = vrot.slane %v255, 2
    %v257 = vadd.f32 %v255, %v256
    %v258 = vrot.slane %v257, 1
    %v259 = vadd.f32 %v257, %v258
    %s260 = vtos %v259
    %s261 = sadd.f32 %s150, %s260
    %v262 = vstv %s261
    %vm263 = vcmask 0
    %264 = vst.msk [vmem:[#allocation7] sm:$0x1] %vm263, %v262
    // Predicated region
    $region18: #{tpu_custom_call.1} parent=1 // pred_check
      _
    $region19: #{tpu_custom_call.1} parent=1 // pred_check_branch
      %266 = sbr.rel (0) target = $region21
    $region20: #{tpu_custom_call.1} parent=1 // pred_region
      %s268 = ssub.s32 16, 16
      %269 = vsyncadd [#allocation4], %s268
      %s271 = sshll.u32 [#allocation7], 4
      %s272 = int_to_ptr.vmem [resolvable:$true] %s271
      %274 = dma.vmem_to_hbm [thread:$0]  %s272, 16, %s2, [#allocation4]
    $region21: #{tpu_custom_call.1} parent=1 // pred_fallthru
      _
    // Predicated region
    $region22: #{tpu_custom_call.1} parent=1 // pred_check
      _
    $region23: #{tpu_custom_call.1} parent=1 // pred_check_branch
      %276 = sbr.rel (0) target = $region25
    $region24: #{tpu_custom_call.1} parent=1 // pred_region
      %277 = dma.done [#allocation4], 16
    $region25: #{tpu_custom_call.1} parent=1 // pred_fallthru
      _
    %278 = vsyncpa [#allocation3], 1
    %279 = vsyncpa [#allocation6], 1
    %280 = vsyncpa [#allocation4], 1

</llo_original>
